<compile_context>
chip_gen: v5e
topology: v5e:2x2
jax: 0.10.0
libtpu: 0.0.40
codegen_flags: <defaults>
</compile_context>

<pallas_src>
import functools

import jax
import jax.numpy as jnp
from jax.experimental import pallas as pl
from jax.experimental.pallas import tpu as pltpu


def _round_up(x, m):
    return ((x + m - 1) // m) * m


def _decoder_mlp_kernel(x_ref, w1_ref, b1_ref, w2_ref, b2_ref, out_ref, *,
                        activation):
    # Upcast right after load; accumulate everything in f32.
    x = x_ref[...].astype(jnp.float32)          # [TB, Din]
    w1 = w1_ref[...].astype(jnp.float32)        # [Din, H]
    b1 = b1_ref[...].astype(jnp.float32)        # [1, H]
    w2 = w2_ref[...].astype(jnp.float32)        # [H, L]
    b2 = b2_ref[...].astype(jnp.float32)        # [1, L]

    # Hidden layer (MXU) + bias + activation (VPU / EUP).
    h = jnp.dot(x, w1, preferred_element_type=jnp.float32) + b1
    if activation == "relu":
        h = jnp.maximum(h, 0.0)
    elif activation == "tanh":
        h = jnp.tanh(h)
    else:
        # TODO(synk): module takes an arbitrary `activation`; only relu/tanh
        # are lowered statically here.
        raise ValueError(f"unsupported activation: {activation}")

    # Output layer (MXU) + bias.
    logits = jnp.dot(h, w2, preferred_element_type=jnp.float32) + b2

    # Numerically stable softmax over dim=1 (last dim of the 2-D tile).
    m = jnp.max(logits, axis=-1, keepdims=True)
    e = jnp.exp(logits - m)
    denom = jnp.sum(e, axis=-1, keepdims=True)
    # (pl.reciprocal(denom, approx=True) would push this to the EUP slot, but
    #  exact division keeps bit-parity with the reference softmax.)
    out_ref[...] = (e / denom).astype(out_ref.dtype)


def decoder_mlp_multiclass(inputs, w1, b1, w2, b2, *, activation="relu",
                           block_rows=256):
    """Forward pass of DecoderMLPMulticlass.

    inputs : [B, in_features]
    w1, b1 : PyTorch nn.Linear layout -> [hidden, in_features], [hidden]
    w2, b2 : [latent, hidden], [latent]
    returns softmax probabilities [B, latent] (f32).
    """
    B, Din = inputs.shape
    H = w1.shape[0]
    L = w2.shape[0]

    # One-time layout plumbing in the wrapper (outside the kernel).
    w1t = jnp.transpose(w1)        # [Din, H]
    w2t = jnp.transpose(w2)        # [H, L]
    b1r = jnp.reshape(b1, (1, H))
    b2r = jnp.reshape(b2, (1, L))

    # Row tile: multiple of 8 sublanes, capped to keep VMEM use small on v7x.
    tb = _round_up(min(block_rows, _round_up(B, 8)), 8)
    b_pad = _round_up(B, tb)
    if b_pad != B:
        inputs = jnp.pad(inputs, ((0, b_pad - B), (0, 0)))

    kernel = functools.partial(_decoder_mlp_kernel, activation=activation)
    out = pl.pallas_call(
        kernel,
        out_shape=jax.ShapeDtypeStruct((b_pad, L), jnp.float32),
        grid_spec=pltpu.PrefetchScalarGridSpec(
            num_scalar_prefetch=0,
            grid=(b_pad // tb,),
            in_specs=[
                pl.BlockSpec((tb, Din), lambda i: (i, 0)),   # inputs (tiled)
                pl.BlockSpec((Din, H), lambda i: (0, 0)),    # W1 (broadcast)
                pl.BlockSpec((1, H), lambda i: (0, 0)),      # b1
                pl.BlockSpec((H, L), lambda i: (0, 0)),      # W2
                pl.BlockSpec((1, L), lambda i: (0, 0)),      # b2
            ],
            out_specs=pl.BlockSpec((tb, L), lambda i: (i, 0)),
        ),
        compiler_params=pltpu.CompilerParams(
            dimension_semantics=("parallel",),   # batch tiles are independent
            vmem_limit_bytes=32 * 1024 * 1024,   # safe on v7x (32 MiB scoped)
        ),
    )(inputs, w1t, b1r, w2t, b2r)
    return out[:B]


def _reference(inputs, w1, b1, w2, b2, activation="relu"):
    """Pure-JAX reference mirroring the PyTorch module."""
    h = inputs.astype(jnp.float32) @ w1.T.astype(jnp.float32) + b1.astype(jnp.float32)
    if activation == "relu":
        h = jnp.maximum(h, 0.0)
    else:
        h = jnp.tanh(h)
    logits = h @ w2.T.astype(jnp.float32) + b2.astype(jnp.float32)
    return jax.nn.softmax(logits, axis=1)


if __name__ == "__main__":
    B, Din, H, L = 8, 32, 32, 8   # batch, in_features, hidden_dim, latent_dim

    key = jax.random.PRNGKey(0)
    k1, k2, k3, k4, k5 = jax.random.split(key, 5)

    inputs = jax.random.normal(k1, (B, Din), jnp.float32)
    # PyTorch nn.Linear layout: weight [out, in], bias [out].
    w1 = jax.random.normal(k2, (H, Din), jnp.float32) * (1.0 / Din ** 0.5)
    b1 = 0.1 * jax.random.normal(k3, (H,), jnp.float32)
    w2 = jax.random.normal(k4, (L, H), jnp.float32) * (1.0 / H ** 0.5)
    b2 = 0.1 * jax.random.normal(k5, (L,), jnp.float32)

    out = decoder_mlp_multiclass(inputs, w1, b1, w2, b2, activation="relu")
    out = jax.block_until_ready(out)

    ref = _reference(inputs, w1, b1, w2, b2, activation="relu")
    assert out.shape == (B, L), out.shape
    assert jnp.allclose(out, ref, rtol=1e-5, atol=1e-5), (out, ref)
    row_sums = jnp.sum(out, axis=1)
    assert jnp.allclose(row_sums, jnp.ones_like(row_sums), rtol=1e-5, atol=1e-5)

    print("KERNEL_OK")
</pallas_src>

<mosaic_0001>
module attributes {stable_mosaic.version = 11 : i64} {
  func.func @_decoder_mlp_kernel(%arg0: i32, %arg1: memref<8x32xf32, #tpu.memory_space<vmem>>, %arg2: memref<32x32xf32, #tpu.memory_space<vmem>>, %arg3: memref<1x32xf32, #tpu.memory_space<vmem>>, %arg4: memref<32x8xf32, #tpu.memory_space<vmem>>, %arg5: memref<1x8xf32, #tpu.memory_space<vmem>>, %arg6: memref<8x8xf32, #tpu.memory_space<vmem>>) attributes {dimension_semantics = [#tpu.dimension_semantics<parallel>], iteration_bounds = array<i64: 1>, scalar_prefetch = 0 : i64, scratch_operands = 0 : i64, tpu.core_type = #tpu.core_type<tc>, window_params = [{transform_indices = @transform_0, window_bounds = array<i64: 8, 32>}, {pipeline_mode = #tpu.pipeline_mode<synchronous>, transform_indices = @transform_1, window_bounds = array<i64: 32, 32>}, {pipeline_mode = #tpu.pipeline_mode<synchronous>, transform_indices = @transform_2, window_bounds = array<i64: 1, 32>}, {pipeline_mode = #tpu.pipeline_mode<synchronous>, transform_indices = @transform_3, window_bounds = array<i64: 32, 8>}, {pipeline_mode = #tpu.pipeline_mode<synchronous>, transform_indices = @transform_4, window_bounds = array<i64: 1, 8>}, {transform_indices = @transform_5, window_bounds = array<i64: 8, 8>}]} {
    %c0 = arith.constant 0 : index
    %c0_0 = arith.constant 0 : index
    %0 = vector.load %arg1[%c0, %c0_0] : memref<8x32xf32, #tpu.memory_space<vmem>>, vector<8x32xf32>
    %c0_1 = arith.constant 0 : index
    %c0_2 = arith.constant 0 : index
    %1 = vector.load %arg2[%c0_1, %c0_2] : memref<32x32xf32, #tpu.memory_space<vmem>>, vector<32x32xf32>
    %c0_3 = arith.constant 0 : index
    %c0_4 = arith.constant 0 : index
    %2 = vector.load %arg3[%c0_3, %c0_4] : memref<1x32xf32, #tpu.memory_space<vmem>>, vector<1x32xf32>
    %c0_5 = arith.constant 0 : index
    %c0_6 = arith.constant 0 : index
    %3 = vector.load %arg4[%c0_5, %c0_6] : memref<32x8xf32, #tpu.memory_space<vmem>>, vector<32x8xf32>
    %c0_7 = arith.constant 0 : index
    %c0_8 = arith.constant 0 : index
    %4 = vector.load %arg5[%c0_7, %c0_8] : memref<1x8xf32, #tpu.memory_space<vmem>>, vector<1x8xf32>
    %cst = arith.constant dense<0.000000e+00> : vector<8x32xf32>
    %5 = tpu.matmul %0, %1, %cst {dimension_numbers = #tpu.dot_dimension_numbers<[1], [0], [0], [1], [0, 0, 1, 1], [], []>} : vector<8x32xf32>, vector<32x32xf32>, vector<8x32xf32> -> vector<8x32xf32>
    %6 = vector.broadcast %2 : vector<1x32xf32> to vector<8x32xf32>
    %7 = arith.addf %5, %6 : vector<8x32xf32>
    %cst_9 = arith.constant 0.000000e+00 : f32
    %8 = vector.broadcast %cst_9 : f32 to vector<8x32xf32>
    %9 = arith.maximumf %7, %8 : vector<8x32xf32>
    %cst_10 = arith.constant dense<0.000000e+00> : vector<8x8xf32>
    %10 = tpu.matmul %9, %3, %cst_10 {dimension_numbers = #tpu.dot_dimension_numbers<[1], [0], [0], [1], [0, 0, 1, 1], [], []>} : vector<8x32xf32>, vector<32x8xf32>, vector<8x8xf32> -> vector<8x8xf32>
    %11 = vector.broadcast %4 : vector<1x8xf32> to vector<8x8xf32>
    %12 = arith.addf %10, %11 : vector<8x8xf32>
    %cst_11 = arith.constant dense<0xFF800000> : vector<8xf32>
    %13 = vector.multi_reduction <maximumf>, %12, %cst_11 [1] : vector<8x8xf32> to vector<8xf32>
    %14 = vector.shape_cast %13 : vector<8xf32> to vector<8x1xf32>
    %15 = vector.broadcast %14 : vector<8x1xf32> to vector<8x8xf32>
    %16 = arith.subf %12, %15 : vector<8x8xf32>
    %17 = math.exp %16 : vector<8x8xf32>
    %cst_12 = arith.constant dense<0.000000e+00> : vector<8xf32>
    %18 = vector.multi_reduction <add>, %17, %cst_12 [1] : vector<8x8xf32> to vector<8xf32>
    %19 = vector.shape_cast %18 : vector<8xf32> to vector<8x1xf32>
    %20 = vector.broadcast %19 : vector<8x1xf32> to vector<8x8xf32>
    %21 = arith.divf %17, %20 : vector<8x8xf32>
    %c0_13 = arith.constant 0 : index
    %c0_14 = arith.constant 0 : index
    %22 = vector.load %arg6[%c0_13, %c0_14] : memref<8x8xf32, #tpu.memory_space<vmem>>, vector<8x8xf32>
    tpu.vector_store %arg6[%c0_13, %c0_14], %21 {strides = array<i32>} : memref<8x8xf32, #tpu.memory_space<vmem>>, vector<8x8xf32>,
    return
  }
  func.func @transform_0(%arg0: i32) -> (i32, i32) {
    %c0_i32 = arith.constant 0 : i32
    %c0_i32_0 = arith.constant 0 : i32
    return %arg0, %c0_i32 : i32, i32
  }
  func.func @transform_1(%arg0: i32) -> (i32, i32) {
    %c0_i32 = arith.constant 0 : i32
    %c0_i32_0 = arith.constant 0 : i32
    %c0_i32_1 = arith.constant 0 : i32
    return %c0_i32, %c0_i32_0 : i32, i32
  }
  func.func @transform_2(%arg0: i32) -> (i32, i32) {
    %c0_i32 = arith.constant 0 : i32
    %c0_i32_0 = arith.constant 0 : i32
    %c0_i32_1 = arith.constant 0 : i32
    return %c0_i32, %c0_i32_0 : i32, i32
  }
  func.func @transform_3(%arg0: i32) -> (i32, i32) {
    %c0_i32 = arith.constant 0 : i32
    %c0_i32_0 = arith.constant 0 : i32
    %c0_i32_1 = arith.constant 0 : i32
    return %c0_i32, %c0_i32_0 : i32, i32
  }
  func.func @transform_4(%arg0: i32) -> (i32, i32) {
    %c0_i32 = arith.constant 0 : i32
    %c0_i32_0 = arith.constant 0 : i32
    %c0_i32_1 = arith.constant 0 : i32
    return %c0_i32, %c0_i32_0 : i32, i32
  }
  func.func @transform_5(%arg0: i32) -> (i32, i32) {
    %c0_i32 = arith.constant 0 : i32
    %c0_i32_0 = arith.constant 0 : i32
    return %arg0, %c0_i32 : i32, i32
  }
}

</mosaic_0001>

<llo_original>
// kernel: tpu_custom_call.1
$region0: #{tpu_custom_call.1}
  #allocation0 [shape = 'u32[]', space=smem, size = 0x4, offset = 0x4, fixed_abs, tag = 'smem constant byte address 0x4 - core index']
  #allocation1 [shape = 'u32[72,128]{1,0:T(1,128)}', space=vmem, size = 0x9000, scoped, tag = 'internal scratch']
  %s0 = inlined_call_operand.vmem [shape: f32[8,32], index: 0, kind: input, shape index: {}]
  %s1 = inlined_call_operand.vmem [shape: f32[32,32], index: 1, kind: input, shape index: {}]
  %s2 = inlined_call_operand.vmem [shape: f32[1,32], index: 2, kind: input, shape index: {}]
  %s3 = inlined_call_operand.vmem [shape: f32[32,8], index: 3, kind: input, shape index: {}]
  %s4 = inlined_call_operand.vmem [shape: f32[1,8], index: 4, kind: input, shape index: {}]
  %s5 = inlined_call_operand.hbm [shape: f32[8,8], index: 5, kind: output, shape index: {}]
  %s6 = sld [smem:[#allocation0]]
  $region30: #{tpu_custom_call.1} parent=0
    _
  %s8 = ssub.s32 1, %s6
  %s9 = scalar_select 0, %s8, %s6
  $region1: #{tpu_custom_call.1} parent=0
    #allocation2 [shape = 'u8[4096]{0}', space=vmem, size = 0x1000, scoped, tag = 'output window, operand 0, single buffered']
    #allocation3 [shape = 's32[1]{0}', space=sflag, size = 0x4, scoped, tag = 'scoped memory for tpu_custom_call.1']
    %10 = vsyncpa [#allocation3], 0
    // Predicated region
    $region2: #{tpu_custom_call.1} parent=1 // pred_check
      _
    $region3: #{tpu_custom_call.1} parent=1 // pred_check_branch
      %12 = sbr.rel (0) target = $region5
    $region4: #{tpu_custom_call.1} parent=1 // pred_region
      _
    $region5: #{tpu_custom_call.1} parent=1 // pred_fallthru
      _
    // Predicated region
    $region6: #{tpu_custom_call.1} parent=1 // pred_check
      _
    $region7: #{tpu_custom_call.1} parent=1 // pred_check_branch
      %14 = sbr.rel (0) target = $region9
    $region8: #{tpu_custom_call.1} parent=1 // pred_region
      _
    $region9: #{tpu_custom_call.1} parent=1 // pred_fallthru
      _
    // Predicated region
    $region10: #{tpu_custom_call.1} parent=1 // pred_check
      _
    $region11: #{tpu_custom_call.1} parent=1 // pred_check_branch
      %16 = sbr.rel (0) target = $region13
    $region12: #{tpu_custom_call.1} parent=1 // pred_region
      _
    $region13: #{tpu_custom_call.1} parent=1 // pred_fallthru
      _
    // Predicated region
    $region14: #{tpu_custom_call.1} parent=1 // pred_check
      _
    $region15: #{tpu_custom_call.1} parent=1 // pred_check_branch
      %18 = sbr.rel (0) target = $region17
    $region16: #{tpu_custom_call.1} parent=1 // pred_region
      _
    $region17: #{tpu_custom_call.1} parent=1 // pred_fallthru
      _
    // Predicated region
    $region18: #{tpu_custom_call.1} parent=1 // pred_check
      _
    $region19: #{tpu_custom_call.1} parent=1 // pred_check_branch
      %20 = sbr.rel (0) target = $region21
    $region20: #{tpu_custom_call.1} parent=1 // pred_region
      _
    $region21: #{tpu_custom_call.1} parent=1 // pred_fallthru
      _
    %v21 = vld [vmem:[%s0] sm:$0xff]
    %v22 = vld [vmem:[%s1] sm:$0xff]
    %v23 = vld [vmem:[%s1 + $0x8] sm:$0xff]
    %v24 = vld [vmem:[%s1 + $0x10] sm:$0xff]
    %v25 = vld [vmem:[%s1 + $0x18] sm:$0xff]
    %v26 = vld [vmem:[%s2] sm:$0x1]
    %v27 = vld [vmem:[%s3] sm:$0xff]
    %v28 = vld [vmem:[%s3 + $0x8] sm:$0xff]
    %v29 = vld [vmem:[%s3 + $0x10] sm:$0xff]
    %v30 = vld [vmem:[%s3 + $0x18] sm:$0xff]
    %v31 = vld [vmem:[%s4] sm:$0x1]
    %v33 = vperm.slane %v26, 0
    %vm35 = vcmask 261120
    %v37 = vsel %vm35, %v21, 0
    %39 = vmatpush.msra.mxu0 0.0
    %40 = vmatpush.msra.mxu0 0.0
    %41 = vmatpush.msra.mxu0 0.0
    %42 = vmatpush.msra.mxu0 0.0
    %43 = vmatpush.msra.mxu0 0.0
    %44 = vmatpush.msra.mxu0 0.0
    %45 = vmatpush.msra.mxu0 0.0
    %46 = vmatpush.msra.mxu0 0.0
    %47 = vmatpush.msra.mxu0 0.0
    %48 = vmatpush.msra.mxu0 0.0
    %49 = vmatpush.msra.mxu0 0.0
    %50 = vmatpush.msra.mxu0 0.0
    %51 = vmatpush.msra.mxu0 %v25
    %52 = vmatpush.msra.mxu0 %v24
    %53 = vmatpush.msra.mxu0 %v23
    %54 = vmatpush.msra.mxu0 %v22
    %55 = vmatmul.f32.gmra.mxu0 %v37
    %v56 = vpop.f32.mrf.mxu0
    %v57 = vadd.f32 %v33, %v56
    %58 = vdwg.mxu0
    %v59 = vmax.f32 %v57, 0.0
    %v61 = vperm.slane %v31, 0
    %v64 = vsel %vm35, %v59, 0
    %66 = vmatpush.msra.mxu0 0.0
    %67 = vmatpush.msra.mxu0 0.0
    %68 = vmatpush.msra.mxu0 0.0
    %69 = vmatpush.msra.mxu0 0.0
    %70 = vmatpush.msra.mxu0 0.0
    %71 = vmatpush.msra.mxu0 0.0
    %72 = vmatpush.msra.mxu0 0.0
    %73 = vmatpush.msra.mxu0 0.0
    %74 = vmatpush.msra.mxu0 0.0
    %75 = vmatpush.msra.mxu0 0.0
    %76 = vmatpush.msra.mxu0 0.0
    %77 = vmatpush.msra.mxu0 0.0
    %78 = vmatpush.msra.mxu0 %v30
    %79 = vmatpush.msra.mxu0 %v29
    %80 = vmatpush.msra.mxu0 %v28
    %81 = vmatpush.msra.mxu0 %v27
    %82 = vmatmul.f32.gmra.mxu0 %v64
    %v83 = vpop.f32.mrf.mxu0
    %v84 = vadd.f32 %v61, %v83
    %85 = vdwg.mxu0
    %vm86 = vcmask 64512
    %v87 = vsel %vm86, %v84, -inf
    %88 = vmax.xlane.f32.xlu0 %v87
    %v89 = vpop.xlane.xlu0 %88
    %v90 = vsub.f32 %v84, %v89
    %v91 = vmul.f32 %v90, 1.442695
    %v92 = vpow.pop %v91
    %v93 = vsel %vm86, %v92, 0.0
    %94 = vadd.xlane.f32.xlu0 %v93
    %v95 = vpop.xlane.xlu0 %94
    %v96 = vrcp.pop %v95
    %v97 = vmul.f32 %v95, %v96
    %v98 = vsub.f32 1.0, %v97
    %v99 = vmul.f32 %v96, %v98
    %v100 = vadd.f32 %v96, %v99
    %vm101 = vweird.f32 %v95
    %vm102 = vweird.f32 %v96
    %vm103 = vmor %vm101, %vm102
    %v104 = vsel %vm103, %v96, %v100
    %v105 = vand.u32 2147483647, %v95
    %vm106 = vcmp.eq.f32.partialorder %v105, 8.507059e+37
    %v107 = vand.u32 %v95, 2147483648
    %v108 = vor.u32 1.1754944e-38, %v107
    %v109 = vsel %vm106, %v108, %v104
    %v110 = vmul.f32 %v92, %v109
    %111 = vst.msk [vmem:[#allocation2] sm:$0xff] %vm86, %v110
    // Predicated region
    $region22: #{tpu_custom_call.1} parent=1 // pred_check
      _
    $region23: #{tpu_custom_call.1} parent=1 // pred_check_branch
      %113 = sbr.rel (0) target = $region25
    $region24: #{tpu_custom_call.1} parent=1 // pred_region
      %115 = vsyncadd [#allocation3], 0
      %s117 = sshll.u32 [#allocation2], 4
      %s118 = int_to_ptr.vmem [resolvable:$true] %s117
      %s119 = sshll.u32 %s5, 4
      %s120 = int_to_ptr.hbm [resolvable:$true] %s119
      %122 = dma.vmem_to_hbm [thread:$0]  %s118, 128, %s120, [#allocation3]
    $region25: #{tpu_custom_call.1} parent=1 // pred_fallthru
      _
    // Predicated region
    $region26: #{tpu_custom_call.1} parent=1 // pred_check
      _
    $region27: #{tpu_custom_call.1} parent=1 // pred_check_branch
      %124 = sbr.rel (0) target = $region29
    $region28: #{tpu_custom_call.1} parent=1 // pred_region
      %126 = dma.done [#allocation3], 128
    $region29: #{tpu_custom_call.1} parent=1 // pred_fallthru
      _
    %127 = vsyncpa [#allocation3], 1

</llo_original>
